<compile_context>
chip_gen: v6e
topology: v6e:2x2x1
jax: 0.10.0
libtpu: 0.0.40
codegen_flags: <defaults>
</compile_context>

<pallas_src>
import jax
import jax.numpy as jnp
from jax.experimental import pallas as pl
from jax.experimental.pallas import tpu as pltpu


def _round_up(n: int, m: int) -> int:
    return ((n + m - 1) // m) * m


def quantum_mlp_kernel(x_ref, w1_ref, b1_ref, w2_ref, b2_ref, w3_ref, b3_ref, o_ref):
    """Fused 3-layer MLP on one batch tile, fully transposed (batch on lanes)."""
    x_t = x_ref[...]                                           # (D, TILE_B)

    # Layer 1: (H, D) @ (D, TILE_B) -> (H, TILE_B).  MXU operands in the weight
    # dtype (bf16 fast path / f32 exact path); f32 accumulation; bias+ReLU on VPU.
    h1 = jnp.dot(w1_ref[...], x_t.astype(w1_ref.dtype),
                 preferred_element_type=jnp.float32)
    h1 = jnp.maximum(h1 + b1_ref[...], 0.0)                    # b1 column (H, 1)

    # Layer 2: (H2, H) @ (H, TILE_B) -> (H2, TILE_B).
    h2 = jnp.dot(w2_ref[...], h1.astype(w2_ref.dtype),
                 preferred_element_type=jnp.float32)
    h2 = jnp.maximum(h2 + b2_ref[...], 0.0)                    # b2 column (H2, 1)

    # Layer 3 (out_features == 1): broadcast-multiply by the (H2, 1) weight column
    # on the VPU and reduce over H2 sublanes on the XLU -- no underutilized M=1
    # MXU pass and no cross-lane transpose.  Store is a lane-dense (1, TILE_B) row.
    out = jnp.sum(w3_ref[...] * h2, axis=0, keepdims=True)     # (1, TILE_B) f32
    o_ref[...] = (out + b3_ref[0, 0]).astype(o_ref.dtype)


def _choose_tile_b(batch, tile_b, d, h, h2, x_itemsize, vmem_budget_bytes):
    """Pick a lane-aligned batch tile: big, but >=2 grid steps when possible and
    within a VMEM budget re-derived from D/H (v7x has only 32 MiB scoped/TC)."""
    b_ceil = _round_up(max(batch, 1), 128)
    tile_b = max(128, _round_up(int(tile_b), 128))
    tile_b = min(tile_b, b_ceil)

    # Keep >= 2 grid steps when the batch allows it so CORE_PARALLEL can hand
    # work to both v7x TensorCores (a single-step grid leaves the second TC idle).
    if tile_b >= b_ceil and b_ceil >= 256:
        tile_b = _round_up(b_ceil // 2, 128)

    def step_vmem_bytes(t):
        # Double-buffered x and out blocks + f32 h1/h2 temporaries, with 2x
        # headroom for layout padding / resident weights.
        x_blk = 2 * max(d, 8) * t * x_itemsize
        o_blk = 2 * 8 * t * 4                      # (1, t) block pads to 8 sublanes
        temps = (max(h, 8) + max(h2, 8)) * t * 4
        return 2 * (x_blk + o_blk + temps)

    while tile_b > 128 and step_vmem_bytes(tile_b) > vmem_budget_bytes:
        tile_b = max(128, _round_up(tile_b // 2, 128))
    return tile_b


def quantum_mlp_forward(x, params, *, tile_b=4096, use_bf16_matmul=False):
    """Run the fused Pallas MLP.

    x: (B, D) float32
    params: dict with w1 (D,H), b1 (1,H), w2 (H,H2), b2 (1,H2), w3 (H2,1), b3 (1,1)
    Returns (B, 1) float32.
    """
    B, D = x.shape
    H = params["w1"].shape[1]
    H2 = params["w2"].shape[1]

    mm_dtype = jnp.bfloat16 if use_bf16_matmul else jnp.float32

    # --- parameter / input prep (done once in the wrapper, not per grid step) ---
    # Transposed weights are exactly PyTorch's nn.Linear (out, in) layout; biases
    # become columns so they broadcast over the lane (batch) axis.
    w1t = params["w1"].T.astype(mm_dtype)                   # (H, D)
    w2t = params["w2"].T.astype(mm_dtype)                   # (H2, H)
    b1c = params["b1"].reshape(H, 1).astype(jnp.float32)    # (H, 1)
    b2c = params["b2"].reshape(H2, 1).astype(jnp.float32)   # (H2, 1)
    w3c = params["w3"].reshape(H2, 1).astype(jnp.float32)   # (H2, 1)
    b3 = params["b3"].reshape(1, 1).astype(jnp.float32)     # SMEM scalar

    # Batch-on-lanes input.  On the bf16 path the cast fuses with this transpose
    # (one XLA pass over x) and halves the dominant HBM stream into the kernel.
    # TODO(synk): have the upstream quantum_features kernel emit (D, B) directly
    # so this wrapper transpose disappears entirely.
    x_t = x.T.astype(mm_dtype) if use_bf16_matmul else x.T  # (D, B)

    vmem_limit = 32 * 1024 * 1024                # safe scoped limit on v5e/v6e/v7x
    tile_b = _choose_tile_b(B, tile_b, D, H, H2, x_t.dtype.itemsize,
                            vmem_budget_bytes=(3 * vmem_limit) // 4)
    grid_b = pl.cdiv(B, tile_b)                  # no jnp.pad: ragged tail is masked

    flops = 2 * B * (D * H + H * H2 + H2)
    bytes_accessed = (
        x_t.size * x_t.dtype.itemsize
        + w1t.size * w1t.dtype.itemsize + w2t.size * w2t.dtype.itemsize
        + (b1c.size + b2c.size + w3c.size + b3.size) * 4
        + B * 4)

    def call(batch_semantics):
        return pl.pallas_call(
            quantum_mlp_kernel,
            out_shape=jax.ShapeDtypeStruct((1, B), jnp.float32),
            grid=(grid_b,),
            in_specs=[
                pl.BlockSpec((D, tile_b), lambda i: (0, i)),   # x^T: streamed over batch
                pl.BlockSpec((H, D), lambda i: (0, 0)),        # w1^T: resident
                pl.BlockSpec((H, 1), lambda i: (0, 0)),        # b1 column: resident
                pl.BlockSpec((H2, H), lambda i: (0, 0)),       # w2^T: resident
                pl.BlockSpec((H2, 1), lambda i: (0, 0)),       # b2 column: resident
                pl.BlockSpec((H2, 1), lambda i: (0, 0)),       # w3 column: resident
                pl.BlockSpec(memory_space=pltpu.SMEM),         # b3 scalar
            ],
            out_specs=pl.BlockSpec((1, tile_b), lambda i: (0, i)),  # lane-dense row
            compiler_params=pltpu.CompilerParams(
                dimension_semantics=(batch_semantics,),
                vmem_limit_bytes=vmem_limit,
            ),
            cost_estimate=pl.CostEstimate(
                flops=flops, transcendentals=0, bytes_accessed=bytes_accessed),
        )(x_t, w1t, b1c, w2t, b2c, w3c, b3)

    try:
        # Explicit per-TensorCore sharding of the batch axis (engages both v7x
        # TCs); plain "parallel" does not actually split work across cores.
        out_row = call(pltpu.CORE_PARALLEL)
    except Exception:
        # Backend/chip without CORE_PARALLEL support: fall back (single-TC chips
        # lose nothing; the grid just runs sequentially).
        out_row = call(pltpu.PARALLEL)

    # Layout plumbing only: (1, B) lane-dense row -> (B, 1) column.
    return out_row[0, :, None]


def init_params(key, input_dim, hidden_dim):
    """Deterministic init mimicking nn.Linear's uniform(-1/sqrt(fan_in), +) init."""
    h2 = hidden_dim // 2
    keys = jax.random.split(key, 6)

    def lin(kw, kb, fan_in, fan_out):
        bound = 1.0 / jnp.sqrt(fan_in)
        w = jax.random.uniform(kw, (fan_in, fan_out), jnp.float32, -bound, bound)
        b = jax.random.uniform(kb, (1, fan_out), jnp.float32, -bound, bound)
        return w, b

    w1, b1 = lin(keys[0], keys[1], input_dim, hidden_dim)
    w2, b2 = lin(keys[2], keys[3], hidden_dim, h2)
    w3, b3 = lin(keys[4], keys[5], h2, 1)
    return {"w1": w1, "b1": b1, "w2": w2, "b2": b2, "w3": w3, "b3": b3}


def reference_forward(x, p, mm_dtype=jnp.float32):
    """Pure-JAX reference with matching matmul precision."""
    h1 = jnp.maximum(
        jnp.dot(x.astype(mm_dtype), p["w1"].astype(mm_dtype),
                preferred_element_type=jnp.float32) + p["b1"], 0.0)
    h2 = jnp.maximum(
        jnp.dot(h1.astype(mm_dtype), p["w2"].astype(mm_dtype),
                preferred_element_type=jnp.float32) + p["b2"], 0.0)
    return jnp.dot(h2, p["w3"], preferred_element_type=jnp.float32) + p["b3"]


if __name__ == "__main__":
    # Small shapes consistent with the module; batch=300 is deliberately not a
    # multiple of 128 so the un-padded ragged-tail path and a multi-step grid are
    # exercised (auto tile selection gives tile_b=256, grid=2).
    batch, input_dim, hidden_dim = 300, 16, 32

    key = jax.random.PRNGKey(0)
    k_x, k_p = jax.random.split(key)
    x = jax.random.normal(k_x, (batch, input_dim), jnp.float32)
    params = init_params(k_p, input_dim, hidden_dim)

    # Default path: f32 matmuls (matches the PyTorch f32 module), tight tolerance.
    out_f32 = jax.block_until_ready(quantum_mlp_forward(x, params))
    ref_f32 = reference_forward(x, params, mm_dtype=jnp.float32)
    assert out_f32.shape == (batch, 1), out_f32.shape
    assert jnp.allclose(out_f32, ref_f32, atol=1e-4, rtol=1e-4), "f32 path mismatch"

    # Smaller tile -> 3-step grid with a ragged last block (exercises masking).
    out_small = jax.block_until_ready(quantum_mlp_forward(x, params, tile_b=128))
    assert jnp.allclose(out_small, ref_f32, atol=1e-4, rtol=1e-4), "tile_b=128 mismatch"

    # Opt-in bf16 fast path (bf16 x stream + bf16 MXU operands, f32 accumulation),
    # checked against a JAX reference using the same matmul precision.
    out_bf16 = jax.block_until_ready(
        quantum_mlp_forward(x, params, use_bf16_matmul=True))
    ref_bf16 = reference_forward(x, params, mm_dtype=jnp.bfloat16)
    assert out_bf16.shape == (batch, 1), out_bf16.shape
    assert jnp.allclose(out_bf16, ref_bf16, atol=5e-3, rtol=5e-3), "bf16 path mismatch"

    print("KERNEL_OK")
</pallas_src>

<mosaic_0001>
module attributes {stable_mosaic.version = 11 : i64} {
  func.func @quantum_mlp_kernel(%arg0: i32, %arg1: memref<16x256xf32, #tpu.memory_space<vmem>>, %arg2: memref<32x16xf32, #tpu.memory_space<vmem>>, %arg3: memref<32x1xf32, #tpu.memory_space<vmem>>, %arg4: memref<16x32xf32, #tpu.memory_space<vmem>>, %arg5: memref<16x1xf32, #tpu.memory_space<vmem>>, %arg6: memref<16x1xf32, #tpu.memory_space<vmem>>, %arg7: memref<1x1xf32, #tpu.memory_space<smem>>, %arg8: memref<1x256xf32, #tpu.memory_space<vmem>>) attributes {dimension_semantics = [#tpu.dimension_semantics<core_parallel>], iteration_bounds = array<i64: 2>, scalar_prefetch = 0 : i64, scratch_operands = 0 : i64, tpu.core_type = #tpu.core_type<tc>, window_params = [{transform_indices = @transform_0, window_bounds = array<i64: 16, 256>}, {pipeline_mode = #tpu.pipeline_mode<synchronous>, transform_indices = @transform_1, window_bounds = array<i64: 32, 16>}, {pipeline_mode = #tpu.pipeline_mode<synchronous>, transform_indices = @transform_2, window_bounds = array<i64: 32, 1>}, {pipeline_mode = #tpu.pipeline_mode<synchronous>, transform_indices = @transform_3, window_bounds = array<i64: 16, 32>}, {pipeline_mode = #tpu.pipeline_mode<synchronous>, transform_indices = @transform_4, window_bounds = array<i64: 16, 1>}, {pipeline_mode = #tpu.pipeline_mode<synchronous>, transform_indices = @transform_5, window_bounds = array<i64: 16, 1>}, {transform_indices = @transform_6, window_bounds = array<i64: 1, 1>}, {transform_indices = @transform_7, window_bounds = array<i64: 1, 256>}]} {
    %c0 = arith.constant 0 : index
    %c0_0 = arith.constant 0 : index
    %0 = vector.load %arg1[%c0, %c0_0] : memref<16x256xf32, #tpu.memory_space<vmem>>, vector<16x256xf32>
    %c0_1 = arith.constant 0 : index
    %c0_2 = arith.constant 0 : index
    %1 = vector.load %arg2[%c0_1, %c0_2] : memref<32x16xf32, #tpu.memory_space<vmem>>, vector<32x16xf32>
    %cst = arith.constant dense<0.000000e+00> : vector<32x256xf32>
    %2 = tpu.matmul %1, %0, %cst {dimension_numbers = #tpu.dot_dimension_numbers<[1], [0], [0], [1], [0, 0, 1, 1], [], []>} : vector<32x16xf32>, vector<16x256xf32>, vector<32x256xf32> -> vector<32x256xf32>
    %c0_3 = arith.constant 0 : index
    %c0_4 = arith.constant 0 : index
    %3 = vector.load %arg3[%c0_3, %c0_4] : memref<32x1xf32, #tpu.memory_space<vmem>>, vector<32x1xf32>
    %4 = vector.broadcast %3 : vector<32x1xf32> to vector<32x256xf32>
    %5 = arith.addf %2, %4 : vector<32x256xf32>
    %cst_5 = arith.constant 0.000000e+00 : f32
    %6 = vector.broadcast %cst_5 : f32 to vector<32x256xf32>
    %7 = arith.maximumf %5, %6 : vector<32x256xf32>
    %c0_6 = arith.constant 0 : index
    %c0_7 = arith.constant 0 : index
    %8 = vector.load %arg4[%c0_6, %c0_7] : memref<16x32xf32, #tpu.memory_space<vmem>>, vector<16x32xf32>
    %cst_8 = arith.constant dense<0.000000e+00> : vector<16x256xf32>
    %9 = tpu.matmul %8, %7, %cst_8 {dimension_numbers = #tpu.dot_dimension_numbers<[1], [0], [0], [1], [0, 0, 1, 1], [], []>} : vector<16x32xf32>, vector<32x256xf32>, vector<16x256xf32> -> vector<16x256xf32>
    %c0_9 = arith.constant 0 : index
    %c0_10 = arith.constant 0 : index
    %10 = vector.load %arg5[%c0_9, %c0_10] : memref<16x1xf32, #tpu.memory_space<vmem>>, vector<16x1xf32>
    %11 = vector.broadcast %10 : vector<16x1xf32> to vector<16x256xf32>
    %12 = arith.addf %9, %11 : vector<16x256xf32>
    %cst_11 = arith.constant 0.000000e+00 : f32
    %13 = vector.broadcast %cst_11 : f32 to vector<16x256xf32>
    %14 = arith.maximumf %12, %13 : vector<16x256xf32>
    %c0_12 = arith.constant 0 : index
    %c0_13 = arith.constant 0 : index
    %15 = vector.load %arg6[%c0_12, %c0_13] : memref<16x1xf32, #tpu.memory_space<vmem>>, vector<16x1xf32>
    %16 = vector.broadcast %15 : vector<16x1xf32> to vector<16x256xf32>
    %17 = arith.mulf %16, %14 : vector<16x256xf32>
    %cst_14 = arith.constant dense<0.000000e+00> : vector<256xf32>
    %18 = vector.multi_reduction <add>, %17, %cst_14 [0] : vector<16x256xf32> to vector<256xf32>
    %19 = vector.shape_cast %18 : vector<256xf32> to vector<1x256xf32>
    %c0_15 = arith.constant 0 : index
    %c0_16 = arith.constant 0 : index
    %20 = memref.load %arg7[%c0_15, %c0_16] : memref<1x1xf32, #tpu.memory_space<smem>>
    %21 = vector.broadcast %20 : f32 to vector<1x256xf32>
    %22 = arith.addf %19, %21 : vector<1x256xf32>
    %c0_17 = arith.constant 0 : index
    %c0_18 = arith.constant 0 : index
    %23 = vector.load %arg8[%c0_17, %c0_18] : memref<1x256xf32, #tpu.memory_space<vmem>>, vector<1x256xf32>
    tpu.vector_store %arg8[%c0_17, %c0_18], %22 {strides = array<i32>} : memref<1x256xf32, #tpu.memory_space<vmem>>, vector<1x256xf32>,
    return
  }
  func.func @transform_0(%arg0: i32) -> (i32, i32) {
    %c0_i32 = arith.constant 0 : i32
    %c0_i32_0 = arith.constant 0 : i32
    return %c0_i32, %arg0 : i32, i32
  }
  func.func @transform_1(%arg0: i32) -> (i32, i32) {
    %c0_i32 = arith.constant 0 : i32
    %c0_i32_0 = arith.constant 0 : i32
    %c0_i32_1 = arith.constant 0 : i32
    return %c0_i32, %c0_i32_0 : i32, i32
  }
  func.func @transform_2(%arg0: i32) -> (i32, i32) {
    %c0_i32 = arith.constant 0 : i32
    %c0_i32_0 = arith.constant 0 : i32
    %c0_i32_1 = arith.constant 0 : i32
    return %c0_i32, %c0_i32_0 : i32, i32
  }
  func.func @transform_3(%arg0: i32) -> (i32, i32) {
    %c0_i32 = arith.constant 0 : i32
    %c0_i32_0 = arith.constant 0 : i32
    %c0_i32_1 = arith.constant 0 : i32
    return %c0_i32, %c0_i32_0 : i32, i32
  }
  func.func @transform_4(%arg0: i32) -> (i32, i32) {
    %c0_i32 = arith.constant 0 : i32
    %c0_i32_0 = arith.constant 0 : i32
    %c0_i32_1 = arith.constant 0 : i32
    return %c0_i32, %c0_i32_0 : i32, i32
  }
  func.func @transform_5(%arg0: i32) -> (i32, i32) {
    %c0_i32 = arith.constant 0 : i32
    %c0_i32_0 = arith.constant 0 : i32
    %c0_i32_1 = arith.constant 0 : i32
    return %c0_i32, %c0_i32_0 : i32, i32
  }
  func.func @transform_6(%arg0: i32) -> (i32, i32) {
    %c0_i32 = arith.constant 0 : i32
    %c0_i32_0 = arith.constant 0 : i32
    %c0_i32_1 = arith.constant 0 : i32
    return %c0_i32, %c0_i32_0 : i32, i32
  }
  func.func @transform_7(%arg0: i32) -> (i32, i32) {
    %c0_i32 = arith.constant 0 : i32
    %c0_i32_0 = arith.constant 0 : i32
    return %c0_i32, %arg0 : i32, i32
  }
}

module attributes {stable_mosaic.version = 11 : i64} {
  func.func @quantum_mlp_kernel(%arg0: i32, %arg1: memref<16x256xf32, #tpu.memory_space<vmem>>, %arg2: memref<32x16xf32, #tpu.memory_space<vmem>>, %arg3: memref<32x1xf32, #tpu.memory_space<vmem>>, %arg4: memref<16x32xf32, #tpu.memory_space<vmem>>, %arg5: memref<16x1xf32, #tpu.memory_space<vmem>>, %arg6: memref<16x1xf32, #tpu.memory_space<vmem>>, %arg7: memref<1x1xf32, #tpu.memory_space<smem>>, %arg8: memref<1x256xf32, #tpu.memory_space<vmem>>) attributes {dimension_semantics = [#tpu.dimension_semantics<parallel>], iteration_bounds = array<i64: 2>, scalar_prefetch = 0 : i64, scratch_operands = 0 : i64, tpu.core_type = #tpu.core_type<tc>, window_params = [{transform_indices = @transform_0, window_bounds = array<i64: 16, 256>}, {pipeline_mode = #tpu.pipeline_mode<synchronous>, transform_indices = @transform_1, window_bounds = array<i64: 32, 16>}, {pipeline_mode = #tpu.pipeline_mode<synchronous>, transform_indices = @transform_2, window_bounds = array<i64: 32, 1>}, {pipeline_mode = #tpu.pipeline_mode<synchronous>, transform_indices = @transform_3, window_bounds = array<i64: 16, 32>}, {pipeline_mode = #tpu.pipeline_mode<synchronous>, transform_indices = @transform_4, window_bounds = array<i64: 16, 1>}, {pipeline_mode = #tpu.pipeline_mode<synchronous>, transform_indices = @transform_5, window_bounds = array<i64: 16, 1>}, {transform_indices = @transform_6, window_bounds = array<i64: 1, 1>}, {transform_indices = @transform_7, window_bounds = array<i64: 1, 256>}]} {
    %c0 = arith.constant 0 : index
    %c0_0 = arith.constant 0 : index
    %0 = vector.load %arg1[%c0, %c0_0] : memref<16x256xf32, #tpu.memory_space<vmem>>, vector<16x256xf32>
    %c0_1 = arith.constant 0 : index
    %c0_2 = arith.constant 0 : index
    %1 = vector.load %arg2[%c0_1, %c0_2] : memref<32x16xf32, #tpu.memory_space<vmem>>, vector<32x16xf32>
    %cst = arith.constant dense<0.000000e+00> : vector<32x256xf32>
    %2 = tpu.matmul %1, %0, %cst {dimension_numbers = #tpu.dot_dimension_numbers<[1], [0], [0], [1], [0, 0, 1, 1], [], []>} : vector<32x16xf32>, vector<16x256xf32>, vector<32x256xf32> -> vector<32x256xf32>
    %c0_3 = arith.constant 0 : index
    %c0_4 = arith.constant 0 : index
    %3 = vector.load %arg3[%c0_3, %c0_4] : memref<32x1xf32, #tpu.memory_space<vmem>>, vector<32x1xf32>
    %4 = vector.broadcast %3 : vector<32x1xf32> to vector<32x256xf32>
    %5 = arith.addf %2, %4 : vector<32x256xf32>
    %cst_5 = arith.constant 0.000000e+00 : f32
    %6 = vector.broadcast %cst_5 : f32 to vector<32x256xf32>
    %7 = arith.maximumf %5, %6 : vector<32x256xf32>
    %c0_6 = arith.constant 0 : index
    %c0_7 = arith.constant 0 : index
    %8 = vector.load %arg4[%c0_6, %c0_7] : memref<16x32xf32, #tpu.memory_space<vmem>>, vector<16x32xf32>
    %cst_8 = arith.constant dense<0.000000e+00> : vector<16x256xf32>
    %9 = tpu.matmul %8, %7, %cst_8 {dimension_numbers = #tpu.dot_dimension_numbers<[1], [0], [0], [1], [0, 0, 1, 1], [], []>} : vector<16x32xf32>, vector<32x256xf32>, vector<16x256xf32> -> vector<16x256xf32>
    %c0_9 = arith.constant 0 : index
    %c0_10 = arith.constant 0 : index
    %10 = vector.load %arg5[%c0_9, %c0_10] : memref<16x1xf32, #tpu.memory_space<vmem>>, vector<16x1xf32>
    %11 = vector.broadcast %10 : vector<16x1xf32> to vector<16x256xf32>
    %12 = arith.addf %9, %11 : vector<16x256xf32>
    %cst_11 = arith.constant 0.000000e+00 : f32
    %13 = vector.broadcast %cst_11 : f32 to vector<16x256xf32>
    %14 = arith.maximumf %12, %13 : vector<16x256xf32>
    %c0_12 = arith.constant 0 : index
    %c0_13 = arith.constant 0 : index
    %15 = vector.load %arg6[%c0_12, %c0_13] : memref<16x1xf32, #tpu.memory_space<vmem>>, vector<16x1xf32>
    %16 = vector.broadcast %15 : vector<16x1xf32> to vector<16x256xf32>
    %17 = arith.mulf %16, %14 : vector<16x256xf32>
    %cst_14 = arith.constant dense<0.000000e+00> : vector<256xf32>
    %18 = vector.multi_reduction <add>, %17, %cst_14 [0] : vector<16x256xf32> to vector<256xf32>
    %19 = vector.shape_cast %18 : vector<256xf32> to vector<1x256xf32>
    %c0_15 = arith.constant 0 : index
    %c0_16 = arith.constant 0 : index
    %20 = memref.load %arg7[%c0_15, %c0_16] : memref<1x1xf32, #tpu.memory_space<smem>>
    %21 = vector.broadcast %20 : f32 to vector<1x256xf32>
    %22 = arith.addf %19, %21 : vector<1x256xf32>
    %c0_17 = arith.constant 0 : index
    %c0_18 = arith.constant 0 : index
    %23 = vector.load %arg8[%c0_17, %c0_18] : memref<1x256xf32, #tpu.memory_space<vmem>>, vector<1x256xf32>
    tpu.vector_store %arg8[%c0_17, %c0_18], %22 {strides = array<i32>} : memref<1x256xf32, #tpu.memory_space<vmem>>, vector<1x256xf32>,
    return
  }
  func.func @transform_0(%arg0: i32) -> (i32, i32) {
    %c0_i32 = arith.constant 0 : i32
    %c0_i32_0 = arith.constant 0 : i32
    return %c0_i32, %arg0 : i32, i32
  }
  func.func @transform_1(%arg0: i32) -> (i32, i32) {
    %c0_i32 = arith.constant 0 : i32
    %c0_i32_0 = arith.constant 0 : i32
    %c0_i32_1 = arith.constant 0 : i32
    return %c0_i32, %c0_i32_0 : i32, i32
  }
  func.func @transform_2(%arg0: i32) -> (i32, i32) {
    %c0_i32 = arith.constant 0 : i32
    %c0_i32_0 = arith.constant 0 : i32
    %c0_i32_1 = arith.constant 0 : i32
    return %c0_i32, %c0_i32_0 : i32, i32
  }
  func.func @transform_3(%arg0: i32) -> (i32, i32) {
    %c0_i32 = arith.constant 0 : i32
    %c0_i32_0 = arith.constant 0 : i32
    %c0_i32_1 = arith.constant 0 : i32
    return %c0_i32, %c0_i32_0 : i32, i32
  }
  func.func @transform_4(%arg0: i32) -> (i32, i32) {
    %c0_i32 = arith.constant 0 : i32
    %c0_i32_0 = arith.constant 0 : i32
    %c0_i32_1 = arith.constant 0 : i32
    return %c0_i32, %c0_i32_0 : i32, i32
  }
  func.func @transform_5(%arg0: i32) -> (i32, i32) {
    %c0_i32 = arith.constant 0 : i32
    %c0_i32_0 = arith.constant 0 : i32
    %c0_i32_1 = arith.constant 0 : i32
    return %c0_i32, %c0_i32_0 : i32, i32
  }
  func.func @transform_6(%arg0: i32) -> (i32, i32) {
    %c0_i32 = arith.constant 0 : i32
    %c0_i32_0 = arith.constant 0 : i32
    %c0_i32_1 = arith.constant 0 : i32
    return %c0_i32, %c0_i32_0 : i32, i32
  }
  func.func @transform_7(%arg0: i32) -> (i32, i32) {
    %c0_i32 = arith.constant 0 : i32
    %c0_i32_0 = arith.constant 0 : i32
    return %c0_i32, %arg0 : i32, i32
  }
}

</mosaic_0001>

<llo_original>
// kernel: tpu_custom_call.1
$region0: #{tpu_custom_call.1}
  #allocation0 [shape = 'u32[]', space=smem, size = 0x4, offset = 0x4, fixed_abs, tag = 'smem constant byte address 0x4 - core index']
  #allocation1 [shape = 'u32[144,128]{1,0:T(1,128)}', space=vmem, size = 0x12000, scoped, tag = 'internal scratch']
  #allocation2 [shape = 'f32[1,1]{1,0:T(1,128)S(6)}', space=smem, size = 0x200, scoped, tag = 'scoped memory for tpu_custom_call.1']
  %s0 = inlined_call_operand.vmem [shape: f32[16,300], index: 0, kind: input, shape index: {}]
  %s1 = inlined_call_operand.vmem [shape: f32[32,16], index: 1, kind: input, shape index: {}]
  %s2 = inlined_call_operand.vmem [shape: f32[32,1], index: 2, kind: input, shape index: {}]
  %s3 = inlined_call_operand.vmem [shape: f32[16,32], index: 3, kind: input, shape index: {}]
  %s4 = inlined_call_operand.vmem [shape: f32[16,1], index: 4, kind: input, shape index: {}]
  %s5 = inlined_call_operand.vmem [shape: f32[16,1], index: 5, kind: input, shape index: {}]
  %s6 = inlined_call_operand.<no memory space> [shape: f32[1,1], index: 6, kind: input, shape index: {}]
  %s7 = inlined_call_operand.hbm [shape: f32[1,300], index: 7, kind: output, shape index: {}]
  %s8 = sld [smem:[#allocation0]]
  $region127: #{tpu_custom_call.1} parent=0
    _
  %s10 = ssub.s32 1, %s8
  %s11 = scalar_select 0, %s10, %s8
  %12 = sst [smem:[#allocation2]] %s6
  $region1: #{tpu_custom_call.1} parent=0
    #allocation3 [shape = 'u8[32768]{0}', space=vmem, size = 0x8000, scoped, tag = 'input window, operand 0']
    #allocation4 [shape = 'u8[2048]{0}', space=vmem, size = 0x800, scoped, tag = 'output window, operand 0']
    #allocation5 [shape = 's32[2]{0}', space=sflag, size = 0x8, scoped, tag = 'scoped memory for tpu_custom_call.1']
    %13 = vsyncpa [#allocation5], 0
    %s14 = scalar_lea.sflag [#allocation5], 1
    %15 = vsyncpa %s14, 0
    loop: start=0, step=1, limit=4
    $region2: #{tpu_custom_call.1} parent=1 // loop_pre_header
      _
    $region3: #{tpu_custom_call.1} parent=1 // loop_header
      %s17 = sphi 0, %s21
      %p18 = scmp.ge.s32.totalorder %s17, 4
      %s27 = sphi 0, %s29
      %s30 = sphi 0, %s27
      %s31 = sphi 0, %s30
      %s47 = sphi 0, %s31
      %s51 = sphi 0, %s51
      %s53 = sphi 0, %s51
      %s54 = sphi 0, %s53
      %s68 = sphi 0, %s54
      %s72 = sphi 0, %s72
      %s74 = sphi 0, %s72
      %s75 = sphi 0, %s74
      %s89 = sphi 0, %s75
      %s93 = sphi 0, %s93
      %s95 = sphi 0, %s93
      %s96 = sphi 0, %s95
      %s110 = sphi 0, %s96
      %s114 = sphi 0, %s114
      %s116 = sphi 0, %s114
      %s117 = sphi 0, %s116
      %s131 = sphi 0, %s117
      %s135 = sphi 0, %s135
      %s137 = sphi 0, %s135
      %s138 = sphi 0, %s137
      %s152 = sphi 0, %s138
      %s156 = sphi 0, %s156
      %s158 = sphi 0, %s156
      %s159 = sphi 0, %s158
      %s173 = sphi 0, %s159
      %s179 = sphi 0, %s181
      %s182 = sphi 0, %s179
      %s183 = sphi 0, %s182
      %s199 = sphi 0, %s183
    $region4: #{tpu_custom_call.1} parent=1 // loop_header_branch
      %20 = sbr.rel (%p18) target = $region8
    $region5: #{tpu_custom_call.1} parent=1 // loop_body
      %s22 = ssub.s32 %s17, 1
      %s23 = ssub.s32 %s17, 2
      %s24 = sadd.s32 %s17, 1
      %s25 = ssub.s32 %s17, %s24
      %p26 = scmp.eq.s32.totalorder %s25, 0
      %s28 = sadd.s32 %s27, 1
      %s29 = scalar_select %p26, %s27, %s28
      %p32 = pneg %p26
      %p33 = scmp.eq.s32.totalorder %s17, 1
      %p34 = por %p32, %p33
      %p35 = scmp.ne.s32.totalorder %s27, %s30
      %p36 = scmp.eq.s32.totalorder %s17, 0
      %p37 = por %p35, %p36
      %p38 = scmp.ne.s32.totalorder %s27, %s30
      %p39 = scmp.eq.s32.totalorder %s22, 1
      %p40 = por %p38, %p39
      %p41 = scmp.ne.s32.totalorder %s30, %s31
      %p42 = scmp.eq.s32.totalorder %s22, 0
      %p43 = por %p41, %p42
      %p44 = scmp.ne.s32.totalorder %s30, %s31
      %p45 = scmp.eq.s32.totalorder %s23, 1
      %p46 = por %p44, %p45
      %p48 = scmp.ne.s32.totalorder %s31, %s47
      %p49 = scmp.eq.s32.totalorder %s23, 0
      %p50 = por %p48, %p49
      %s52 = sadd.s32 %s51, 1
      %p55 = scmp.eq.s32.totalorder %s17, 1
      %p56 = scmp.ne.s32.totalorder %s51, %s53
      %p57 = scmp.eq.s32.totalorder %s17, 0
      %p58 = por %p56, %p57
      %p59 = scmp.ne.s32.totalorder %s51, %s53
      %p60 = scmp.eq.s32.totalorder %s22, 1
      %p61 = por %p59, %p60
      %p62 = scmp.ne.s32.totalorder %s53, %s54
      %p63 = scmp.eq.s32.totalorder %s22, 0
      %p64 = por %p62, %p63
      %p65 = scmp.ne.s32.totalorder %s53, %s54
      %p66 = scmp.eq.s32.totalorder %s23, 1
      %p67 = por %p65, %p66
      %p69 = scmp.ne.s32.totalorder %s54, %s68
      %p70 = scmp.eq.s32.totalorder %s23, 0
      %p71 = por %p69, %p70
      %s73 = sadd.s32 %s72, 1
      %p76 = scmp.eq.s32.totalorder %s17, 1
      %p77 = scmp.ne.s32.totalorder %s72, %s74
      %p78 = scmp.eq.s32.totalorder %s17, 0
      %p79 = por %p77, %p78
      %p80 = scmp.ne.s32.totalorder %s72, %s74
      %p81 = scmp.eq.s32.totalorder %s22, 1
      %p82 = por %p80, %p81
      %p83 = scmp.ne.s32.totalorder %s74, %s75
      %p84 = scmp.eq.s32.totalorder %s22, 0
      %p85 = por %p83, %p84
      %p86 = scmp.ne.s32.totalorder %s74, %s75
      %p87 = scmp.eq.s32.totalorder %s23, 1
      %p88 = por %p86, %p87
      %p90 = scmp.ne.s32.totalorder %s75, %s89
      %p91 = scmp.eq.s32.totalorder %s23, 0
      %p92 = por %p90, %p91
      %s94 = sadd.s32 %s93, 1
      %p97 = scmp.eq.s32.totalorder %s17, 1
      %p98 = scmp.ne.s32.totalorder %s93, %s95
      %p99 = scmp.eq.s32.totalorder %s17, 0
      %p100 = por %p98, %p99
      %p101 = scmp.ne.s32.totalorder %s93, %s95
      %p102 = scmp.eq.s32.totalorder %s22, 1
      %p103 = por %p101, %p102
      %p104 = scmp.ne.s32.totalorder %s95, %s96
      %p105 = scmp.eq.s32.totalorder %s22, 0
      %p106 = por %p104, %p105
      %p107 = scmp.ne.s32.totalorder %s95, %s96
      %p108 = scmp.eq.s32.totalorder %s23, 1
      %p109 = por %p107, %p108
      %p111 = scmp.ne.s32.totalorder %s96, %s110
      %p112 = scmp.eq.s32.totalorder %s23, 0
      %p113 = por %p111, %p112
      %s115 = sadd.s32 %s114, 1
      %p118 = scmp.eq.s32.totalorder %s17, 1
      %p119 = scmp.ne.s32.totalorder %s114, %s116
      %p120 = scmp.eq.s32.totalorder %s17, 0
      %p121 = por %p119, %p120
      %p122 = scmp.ne.s32.totalorder %s114, %s116
      %p123 = scmp.eq.s32.totalorder %s22, 1
      %p124 = por %p122, %p123
      %p125 = scmp.ne.s32.totalorder %s116, %s117
      %p126 = scmp.eq.s32.totalorder %s22, 0
      %p127 = por %p125, %p126
      %p128 = scmp.ne.s32.totalorder %s116, %s117
      %p129 = scmp.eq.s32.totalorder %s23, 1
      %p130 = por %p128, %p129
      %p132 = scmp.ne.s32.totalorder %s117, %s131
      %p133 = scmp.eq.s32.totalorder %s23, 0
      %p134 = por %p132, %p133
      %s136 = sadd.s32 %s135, 1
      %p139 = scmp.eq.s32.totalorder %s17, 1
      %p140 = scmp.ne.s32.totalorder %s135, %s137
      %p141 = scmp.eq.s32.totalorder %s17, 0
      %p142 = por %p140, %p141
      %p143 = scmp.ne.s32.totalorder %s135, %s137
      %p144 = scmp.eq.s32.totalorder %s22, 1
      %p145 = por %p143, %p144
      %p146 = scmp.ne.s32.totalorder %s137, %s138
      %p147 = scmp.eq.s32.totalorder %s22, 0
      %p148 = por %p146, %p147
      %p149 = scmp.ne.s32.totalorder %s137, %s138
      %p150 = scmp.eq.s32.totalorder %s23, 1
      %p151 = por %p149, %p150
      %p153 = scmp.ne.s32.totalorder %s138, %s152
      %p154 = scmp.eq.s32.totalorder %s23, 0
      %p155 = por %p153, %p154
      %s157 = sadd.s32 %s156, 1
      %p160 = scmp.eq.s32.totalorder %s17, 1
      %p161 = scmp.ne.s32.totalorder %s156, %s158
      %p162 = scmp.eq.s32.totalorder %s17, 0
      %p163 = por %p161, %p162
      %p164 = scmp.ne.s32.totalorder %s156, %s158
      %p165 = scmp.eq.s32.totalorder %s22, 1
      %p166 = por %p164, %p165
      %p167 = scmp.ne.s32.totalorder %s158, %s159
      %p168 = scmp.eq.s32.totalorder %s22, 0
      %p169 = por %p167, %p168
      %p170 = scmp.ne.s32.totalorder %s158, %s159
      %p171 = scmp.eq.s32.totalorder %s23, 1
      %p172 = por %p170, %p171
      %p174 = scmp.ne.s32.totalorder %s159, %s173
      %p175 = scmp.eq.s32.totalorder %s23, 0
      %p176 = por %p174, %p175
      %s177 = ssub.s32 %s17, %s24
      %p178 = scmp.eq.s32.totalorder %s177, 0
      %s180 = sadd.s32 %s179, 1
      %s181 = scalar_select %p178, %s179, %s180
      %p184 = pneg %p178
      %p185 = scmp.eq.s32.totalorder %s17, 1
      %p186 = por %p184, %p185
      %p187 = scmp.ne.s32.totalorder %s179, %s182
      %p188 = scmp.eq.s32.totalorder %s17, 0
      %p189 = por %p187, %p188
      %p190 = scmp.ne.s32.totalorder %s179, %s182
      %p191 = scmp.eq.s32.totalorder %s22, 1
      %p192 = por %p190, %p191
      %p193 = scmp.ne.s32.totalorder %s182, %s183
      %p194 = scmp.eq.s32.totalorder %s22, 0
      %p195 = por %p193, %p194
      %p196 = scmp.ne.s32.totalorder %s182, %s183
      %p197 = scmp.eq.s32.totalorder %s23, 1
      %p198 = por %p196, %p197
      %p200 = scmp.ne.s32.totalorder %s183, %s199
      %p201 = scmp.eq.s32.totalorder %s23, 0
      %p202 = por %p200, %p201
      %p203 = scmp.le.s32.totalorder 1, %s17
      %p204 = scmp.lt.s32.totalorder %s17, 3
      %p205 = pnand %p203, %p204
      %p206 = pneg %p205
      // Predicated region
      $region9: #{tpu_custom_call.1} parent=5 // pred_check
        _
      $region10: #{tpu_custom_call.1} parent=5 // pred_check_branch
        %208 = sbr.rel (%p205) target = $region12
      $region11: #{tpu_custom_call.1} parent=5 // pred_region
        %s209 = ssub.s32 %s17, 1
        // Predicated region
        $region13: #{tpu_custom_call.1} parent=11 // pred_check
          %p210 = pneg %p64
        $region14: #{tpu_custom_call.1} parent=11 // pred_check_branch
          %212 = sbr.rel (%p210) target = $region16
        $region15: #{tpu_custom_call.1} parent=11 // pred_region
          _
        $region16: #{tpu_custom_call.1} parent=11 // pred_fallthru
          _
        // Predicated region
        $region17: #{tpu_custom_call.1} parent=11 // pred_check
          %p213 = pneg %p85
        $region18: #{tpu_custom_call.1} parent=11 // pred_check_branch
          %215 = sbr.rel (%p213) target = $region20
        $region19: #{tpu_custom_call.1} parent=11 // pred_region
          _
        $region20: #{tpu_custom_call.1} parent=11 // pred_fallthru
          _
        // Predicated region
        $region21: #{tpu_custom_call.1} parent=11 // pred_check
          %p216 = pneg %p106
        $region22: #{tpu_custom_call.1} parent=11 // pred_check_branch
          %218 = sbr.rel (%p216) target = $region24
        $region23: #{tpu_custom_call.1} parent=11 // pred_region
          _
        $region24: #{tpu_custom_call.1} parent=11 // pred_fallthru
          _
        // Predicated region
        $region25: #{tpu_custom_call.1} parent=11 // pred_check
          %p219 = pneg %p127
        $region26: #{tpu_custom_call.1} parent=11 // pred_check_branch
          %221 = sbr.rel (%p219) target = $region28
        $region27: #{tpu_custom_call.1} parent=11 // pred_region
          _
        $region28: #{tpu_custom_call.1} parent=11 // pred_fallthru
          _
        // Predicated region
        $region29: #{tpu_custom_call.1} parent=11 // pred_check
          %p222 = pneg %p148
        $region30: #{tpu_custom_call.1} parent=11 // pred_check_branch
          %224 = sbr.rel (%p222) target = $region32
        $region31: #{tpu_custom_call.1} parent=11 // pred_region
          _
        $region32: #{tpu_custom_call.1} parent=11 // pred_fallthru
          _
        // Predicated region
        $region33: #{tpu_custom_call.1} parent=11 // pred_check
          %p225 = pneg %p169
        $region34: #{tpu_custom_call.1} parent=11 // pred_check_branch
          %227 = sbr.rel (%p225) target = $region36
        $region35: #{tpu_custom_call.1} parent=11 // pred_region
          _
        $region36: #{tpu_custom_call.1} parent=11 // pred_fallthru
          _
      $region12: #{tpu_custom_call.1} parent=5 // pred_fallthru
        _
      %p228 = scmp.lt.s32.totalorder %s17, 2
      // Predicated region
      $region37: #{tpu_custom_call.1} parent=5 // pred_check
        %p229 = pneg %p228
      $region38: #{tpu_custom_call.1} parent=5 // pred_check_branch
        %231 = sbr.rel (%p229) target = $region40
      $region39: #{tpu_custom_call.1} parent=5 // pred_region
        // Predicated region
        $region41: #{tpu_custom_call.1} parent=39 // pred_check
          %p232 = pneg %p37
        $region42: #{tpu_custom_call.1} parent=39 // pred_check_branch
          %234 = sbr.rel (%p232) target = $region44
        $region43: #{tpu_custom_call.1} parent=39 // pred_region
          %s235 = sand.u32 %s27, 1
          %s236 = sand.u32 %s27, 1
          %s237 = smul.addr %s236, 32
          %s238 = scalar_lea.vmem [#allocation3], %s237
          %s239 = smul.u32 2, %s17
          %s240 = ssub.s32 3, %s239
          %p241 = scmp.lt.s32.totalorder %s240, 2
          %s242 = scalar_select %p241, %s240, 2
          %s243 = smul.u32 256, %s242
          %p244 = scmp.ne.s32.totalorder 0, %s243
          %s245 = smul.addr %s239, 8
          %s246 = scalar_lea.vmem %s0, %s245
          %s247 = smul.u32 %s242, 8
          // Predicated region
          $region45: #{tpu_custom_call.1} parent=43 // pred_check
            %p248 = pneg %p244
          $region46: #{tpu_custom_call.1} parent=43 // pred_check_branch
            %250 = sbr.rel (%p248) target = $region48
          $region47: #{tpu_custom_call.1} parent=43 // pred_region
            %p251 = scmp.lt.u32.totalorder %s247, 8
            %p252 = pneg %p251
            // Predicated region
            $region49: #{tpu_custom_call.1} parent=47 // pred_check
              _
            $region50: #{tpu_custom_call.1} parent=47 // pred_check_branch
              %254 = sbr.rel (%p251) target = $region52
            $region51: #{tpu_custom_call.1} parent=47 // pred_region
              %s272 = sand.u32 %s247, 7
              %p273 = scmp.eq.s32.totalorder %s272, 0
              // Predicated region
              $region64: #{tpu_custom_call.1} parent=51 // pred_check
                %p274 = pneg %p273
              $region65: #{tpu_custom_call.1} parent=51 // pred_check_branch
                %276 = sbr.rel (%p274) target = $region67
              $region66: #{tpu_custom_call.1} parent=51 // pred_region
                %s277 = sshrl.u32 %s247, 3
                %s278 = sshrl.u32 %s277, 5
                // While loop
                $region68: #{tpu_custom_call.1} parent=66 // loop_pre_header
                  _
                $region69: #{tpu_custom_call.1} parent=66 // loop_header
                  %s282 = sphi 0, %s284
                  %p283 = scmp.ge.s32.totalorder %s282, %s278
                  %s287 = sphi 0, %s420
                  %s288 = sphi %s246, %s423
                  %s289 = sphi %s238, %s424
                $region70: #{tpu_custom_call.1} parent=66 // loop_header_branch
                  %286 = sbr.rel (%p283) target = $region74
                $region71: #{tpu_custom_call.1} parent=66 // loop_body
                  %v290 = vld [vmem:[%s288] sm:$0xff]
                  %291 = vst [vmem:[%s289] sm:$0xff] %v290
                  %v292 = vld [vmem:[%s288 + $0x8] sm:$0xff]
                  %293 = vst [vmem:[%s289 + $0x8] sm:$0xff] %v292
                  %v294 = vld [vmem:[%s288 + $0x10] sm:$0xff]
                  %295 = vst [vmem:[%s289 + $0x10] sm:$0xff] %v294
                  %v296 = vld [vmem:[%s288 + $0x18] sm:$0xff]
                  %297 = vst [vmem:[%s289 + $0x18] sm:$0xff] %v296
                  %v298 = vld [vmem:[%s288 + $0x20] sm:$0xff]
                  %299 = vst [vmem:[%s289 + $0x20] sm:$0xff] %v298
                  %v300 = vld [vmem:[%s288 + $0x28] sm:$0xff]
                  %301 = vst [vmem:[%s289 + $0x28] sm:$0xff] %v300
                  %v302 = vld [vmem:[%s288 + $0x30] sm:$0xff]
                  %303 = vst [vmem:[%s289 + $0x30] sm:$0xff] %v302
                  %v304 = vld [vmem:[%s288 + $0x38] sm:$0xff]
                  %305 = vst [vmem:[%s289 + $0x38] sm:$0xff] %v304
                  %v306 = vld [vmem:[%s288 + $0x40] sm:$0xff]
                  %307 = vst [vmem:[%s289 + $0x40] sm:$0xff] %v306
                  %v308 = vld [vmem:[%s288 + $0x48] sm:$0xff]
                  %309 = vst [vmem:[%s289 + $0x48] sm:$0xff] %v308
                  %v310 = vld [vmem:[%s288 + $0x50] sm:$0xff]
                  %311 = vst [vmem:[%s289 + $0x50] sm:$0xff] %v310
                  %v312 = vld [vmem:[%s288 + $0x58] sm:$0xff]
                  %313 = vst [vmem:[%s289 + $0x58] sm:$0xff] %v312
                  %v314 = vld [vmem:[%s288 + $0x60] sm:$0xff]
                  %315 = vst [vmem:[%s289 + $0x60] sm:$0xff] %v314
                  %v316 = vld [vmem:[%s288 + $0x68] sm:$0xff]
                  %317 = vst [vmem:[%s289 + $0x68] sm:$0xff] %v316
                  %v318 = vld [vmem:[%s288 + $0x70] sm:$0xff]
                  %319 = vst [vmem:[%s289 + $0x70] sm:$0xff] %v318
                  %v320 = vld [vmem:[%s288 + $0x78] sm:$0xff]
                  %321 = vst [vmem:[%s289 + $0x78] sm:$0xff] %v320
                  %v322 = vld [vmem:[%s288 + $0x80] sm:$0xff]
                  %323 = vst [vmem:[%s289 + $0x80] sm:$0xff] %v322
                  %v324 = vld [vmem:[%s288 + $0x88] sm:$0xff]
                  %325 = vst [vmem:[%s289 + $0x88] sm:$0xff] %v324
                  %v326 = vld [vmem:[%s288 + $0x90] sm:$0xff]
                  %327 = vst [vmem:[%s289 + $0x90] sm:$0xff] %v326
                  %v328 = vld [vmem:[%s288 + $0x98] sm:$0xff]
                  %329 = vst [vmem:[%s289 + $0x98] sm:$0xff] %v328
                  %v330 = vld [vmem:[%s288 + $0xa0] sm:$0xff]
                  %331 = vst [vmem:[%s289 + $0xa0] sm:$0xff] %v330
                  %v332 = vld [vmem:[%s288 + $0xa8] sm:$0xff]
                  %333 = vst [vmem:[%s289 + $0xa8] sm:$0xff] %v332
                  %v334 = vld [vmem:[%s288 + $0xb0] sm:$0xff]
                  %335 = vst [vmem:[%s289 + $0xb0] sm:$0xff] %v334
                  %v336 = vld [vmem:[%s288 + $0xb8] sm:$0xff]
                  %337 = vst [vmem:[%s289 + $0xb8] sm:$0xff] %v336
                  %v338 = vld [vmem:[%s288 + $0xc0] sm:$0xff]
                  %339 = vst [vmem:[%s289 + $0xc0] sm:$0xff] %v338
                  %v340 = vld [vmem:[%s288 + $0xc8] sm:$0xff]
                  %341 = vst [vmem:[%s289 + $0xc8] sm:$0xff] %v340
                  %v342 = vld [vmem:[%s288 + $0xd0] sm:$0xff]
                  %343 = vst [vmem:[%s289 + $0xd0] sm:$0xff] %v342
                  %v344 = vld [vmem:[%s288 + $0xd8] sm:$0xff]
                  %345 = vst [vmem:[%s289 + $0xd8] sm:$0xff] %v344
                  %v346 = vld [vmem:[%s288 + $0xe0] sm:$0xff]
                  %347 = vst [vmem:[%s289 + $0xe0] sm:$0xff] %v346
                  %v348 = vld [vmem:[%s288 + $0xe8] sm:$0xff]
                  %349 = vst [vmem:[%s289 + $0xe8] sm:$0xff] %v348
                  %v350 = vld [vmem:[%s288 + $0xf0] sm:$0xff]
                  %351 = vst [vmem:[%s289 + $0xf0] sm:$0xff] %v350
                  %v352 = vld [vmem:[%s288 + $0xf8] sm:$0xff]
                  %353 = vst [vmem:[%s289 + $0xf8] sm:$0xff] %v352
                  %v354 = vld [vmem:[%s288 + $0x18] sm:$0xff]
                  %355 = vst [vmem:[%s289 + $0x10] sm:$0xff] %v354
                  %v356 = vld [vmem:[%s288 + $0x20] sm:$0xff]
                  %357 = vst [vmem:[%s289 + $0x18] sm:$0xff] %v356
                  %v358 = vld [vmem:[%s288 + $0x28] sm:$0xff]
                  %359 = vst [vmem:[%s289 + $0x20] sm:$0xff] %v358
                  %v360 = vld [vmem:[%s288 + $0x30] sm:$0xff]
                  %361 = vst [vmem:[%s289 + $0x28] sm:$0xff] %v360
                  %v362 = vld [vmem:[%s288 + $0x38] sm:$0xff]
                  %363 = vst [vmem:[%s289 + $0x30] sm:$0xff] %v362
                  %v364 = vld [vmem:[%s288 + $0x40] sm:$0xff]
                  %365 = vst [vmem:[%s289 + $0x38] sm:$0xff] %v364
                  %v366 = vld [vmem:[%s288 + $0x48] sm:$0xff]
                  %367 = vst [vmem:[%s289 + $0x40] sm:$0xff] %v366
                  %v368 = vld [vmem:[%s288 + $0x50] sm:$0xff]
                  %369 = vst [vmem:[%s289 + $0x48] sm:$0xff] %v368
                  %v370 = vld [vmem:[%s288 + $0x58] sm:$0xff]
                  %371 = vst [vmem:[%s289 + $0x50] sm:$0xff] %v370
                  %v372 = vld [vmem:[%s288 + $0x60] sm:$0xff]
                  %373 = vst [vmem:[%s289 + $0x58] sm:$0xff] %v372
                  %v374 = vld [vmem:[%s288 + $0x68] sm:$0xff]
                  %375 = vst [vmem:[%s289 + $0x60] sm:$0xff] %v374
                  %v376 = vld [vmem:[%s288 + $0x70] sm:$0xff]
                  %377 = vst [vmem:[%s289 + $0x68] sm:$0xff] %v376
                  %v378 = vld [vmem:[%s288 + $0x78] sm:$0xff]
                  %379 = vst [vmem:[%s289 + $0x70] sm:$0xff] %v378
                  %v380 = vld [vmem:[%s288 + $0x80] sm:$0xff]
                  %381 = vst [vmem:[%s289 + $0x78] sm:$0xff] %v380
                  %v382 = vld [vmem:[%s288 + $0x88] sm:$0xff]
                  %383 = vst [vmem:[%s289 + $0x80] sm:$0xff] %v382
                  %v384 = vld [vmem:[%s288 + $0x90] sm:$0xff]
                  %385 = vst [vmem:[%s289 + $0x88] sm:$0xff] %v384
                  %v386 = vld [vmem:[%s288 + $0x98] sm:$0xff]
                  %387 = vst [vmem:[%s289 + $0x90] sm:$0xff] %v386
                  %v388 = vld [vmem:[%s288 + $0xa0] sm:$0xff]
                  %389 = vst [vmem:[%s289 + $0x98] sm:$0xff] %v388
                  %v390 = vld [vmem:[%s288 + $0xa8] sm:$0xff]
                  %391 = vst [vmem:[%s289 + $0xa0] sm:$0xff] %v390
                  %v392 = vld [vmem:[%s288 + $0xb0] sm:$0xff]
                  %393 = vst [vmem:[%s289 + $0xa8] sm:$0xff] %v392
                  %v394 = vld [vmem:[%s288 + $0xb8] sm:$0xff]
                  %395 = vst [vmem:[%s289 + $0xb0] sm:$0xff] %v394
                  %v396 = vld [vmem:[%s288 + $0xc0] sm:$0xff]
                  %397 = vst [vmem:[%s289 + $0xb8] sm:$0xff] %v396
                  %v398 = vld [vmem:[%s288 + $0xc8] sm:$0xff]
                  %399 = vst [vmem:[%s289 + $0xc0] sm:$0xff] %v398
                  %v400 = vld [vmem:[%s288 + $0xd0] sm:$0xff]
                  %401 = vst [vmem:[%s289 + $0xc8] sm:$0xff] %v400
                  %v402 = vld [vmem:[%s288 + $0xd8] sm:$0xff]
                  %403 = vst [vmem:[%s289 + $0xd0] sm:$0xff] %v402
                  %v404 = vld [vmem:[%s288 + $0xe0] sm:$0xff]
                  %405 = vst [vmem:[%s289 + $0xd8] sm:$0xff] %v404
                  %v406 = vld [vmem:[%s288 + $0xe8] sm:$0xff]
                  %407 = vst [vmem:[%s289 + $0xe0] sm:$0xff] %v406
                  %v408 = vld [vmem:[%s288 + $0xf0] sm:$0xff]
                  %409 = vst [vmem:[%s289 + $0xe8] sm:$0xff] %v408
                  %v410 = vld [vmem:[%s288 + $0xf8] sm:$0xff]
                  %411 = vst [vmem:[%s289 + $0xf0] sm:$0xff] %v410
                  %v412 = vld [vmem:[%s288 + $0x100] sm:$0xff]
                  %413 = vst [vmem:[%s289 + $0xf8] sm:$0xff] %v412
                  %v414 = vld [vmem:[%s288 + $0x108] sm:$0xff]
                  %415 = vst [vmem:[%s289 + $0x100] sm:$0xff] %v414
                  %v416 = vld [vmem:[%s288 + $0x110] sm:$0xff]
                  %417 = vst [vmem:[%s289 + $0x108] sm:$0xff] %v416
                  %s418 = sadd.s32 1, %s287
                  %p419 = scmp.ge.s32.totalorder %s418, %s278
                  %s420 = scalar_select %p419, 0, %s418
                  %s421 = smul.u32 %s420, 256
                  %s422 = smul.u32 %s420, 256
                  %s423 = scalar_lea.vmem %s246, %s421
                  %s424 = scalar_lea.vmem %s238, %s422 [#allocation3]
                $region72: #{tpu_custom_call.1} parent=66 // loop_footer
                  %s284 = sadd.s32 %s282, 1
                $region73: #{tpu_custom_call.1} parent=66 // loop_footer_branch
                  %281 = sbr.rel target = $region69
                $region74: #{tpu_custom_call.1} parent=66 // loop_exit
                  _
                %s425 = sshrl.u32 %s277, 5
                %s426 = sand.u32 %s277, 31
                %s427 = smul.u32 %s425, 32
                %s428 = smul.u32 128, %s427
                %s429 = sshra.s32 %s428, 4
                %s430 = scalar_lea.vmem %s246, %s429
                %s431 = smul.u32 128, %s427
                %s432 = sshra.s32 %s431, 4
                %s433 = scalar_lea.vmem %s238, %s432 [#allocation3]
                // While loop
                $region75: #{tpu_custom_call.1} parent=66 // loop_pre_header
                  _
                $region76: #{tpu_custom_call.1} parent=66 // loop_header
                  %s437 = sphi 0, %s439
                  %p438 = scmp.ge.s32.totalorder %s437, %s426
                  %s442 = sphi 0, %s451
                  %s443 = sphi %s430, %s454
                  %s444 = sphi %s433, %s455
                $region77: #{tpu_custom_call.1} parent=66 // loop_header_branch
                  %441 = sbr.rel (%p438) target = $region81
                $region78: #{tpu_custom_call.1} parent=66 // loop_body
                  %v445 = vld [vmem:[%s443] sm:$0xff]
                  %446 = vst [vmem:[%s444] sm:$0xff] %v445
                  %v447 = vld [vmem:[%s443 + $0x18] sm:$0xff]
                  %448 = vst [vmem:[%s444 + $0x10] sm:$0xff] %v447
                  %s449 = sadd.s32 1, %s442
                  %p450 = scmp.ge.s32.totalorder %s449, %s426
                  %s451 = scalar_select %p450, 0, %s449
                  %s452 = smul.u32 %s451, 8
                  %s453 = smul.u32 %s451, 8
                  %s454 = scalar_lea.vmem %s430, %s452
                  %s455 = scalar_lea.vmem %s433, %s453 [#allocation3]
                $region79: #{tpu_custom_call.1} parent=66 // loop_footer
                  %s439 = sadd.s32 %s437, 1
                $region80: #{tpu_custom_call.1} parent=66 // loop_footer_branch
                  %436 = sbr.rel target = $region76
                $region81: #{tpu_custom_call.1} parent=66 // loop_exit
                  _
              $region67: #{tpu_custom_call.1} parent=51 // pred_fallthru
                _
              %p456 = pneg %p273
              // Predicated region
              $region82: #{tpu_custom_call.1} parent=51 // pred_check
                _
              $region83: #{tpu_custom_call.1} parent=51 // pred_check_branch
                %458 = sbr.rel (%p273) target = $region85
              $region84: #{tpu_custom_call.1} parent=51 // pred_region
                %s459 = sand.u32 %s247, 7
                %s460 = ssub.s32 %s247, %s459
                %s461 = scalar_lea.vmem %s246, %s460
                %s462 = ssub.s32 %s247, %s459
                %s463 = scalar_lea.vmem %s238, %s462 [#allocation3]
                %s464 = sshrl.u32 %s247, 3
                %s465 = sshrl.u32 %s464, 5
                // While loop
                $region86: #{tpu_custom_call.1} parent=84 // loop_pre_header
                  _
                $region87: #{tpu_custom_call.1} parent=84 // loop_header
                  %s469 = sphi 0, %s471
                  %p470 = scmp.ge.s32.totalorder %s469, %s465
                  %s474 = sphi 0, %s607
                  %s475 = sphi %s246, %s610
                  %s476 = sphi %s238, %s611
                $region88: #{tpu_custom_call.1} parent=84 // loop_header_branch
                  %473 = sbr.rel (%p470) target = $region92
                $region89: #{tpu_custom_call.1} parent=84 // loop_body
                  %v477 = vld [vmem:[%s475] sm:$0xff]
                  %478 = vst [vmem:[%s476] sm:$0xff] %v477
                  %v479 = vld [vmem:[%s475 + $0x8] sm:$0xff]
                  %480 = vst [vmem:[%s476 + $0x8] sm:$0xff] %v479
                  %v481 = vld [vmem:[%s475 + $0x10] sm:$0xff]
                  %482 = vst [vmem:[%s476 + $0x10] sm:$0xff] %v481
                  %v483 = vld [vmem:[%s475 + $0x18] sm:$0xff]
                  %484 = vst [vmem:[%s476 + $0x18] sm:$0xff] %v483
                  %v485 = vld [vmem:[%s475 + $0x20] sm:$0xff]
                  %486 = vst [vmem:[%s476 + $0x20] sm:$0xff] %v485
                  %v487 = vld [vmem:[%s475 + $0x28] sm:$0xff]
                  %488 = vst [vmem:[%s476 + $0x28] sm:$0xff] %v487
                  %v489 = vld [vmem:[%s475 + $0x30] sm:$0xff]
                  %490 = vst [vmem:[%s476 + $0x30] sm:$0xff] %v489
                  %v491 = vld [vmem:[%s475 + $0x38] sm:$0xff]
                  %492 = vst [vmem:[%s476 + $0x38] sm:$0xff] %v491
                  %v493 = vld [vmem:[%s475 + $0x40] sm:$0xff]
                  %494 = vst [vmem:[%s476 + $0x40] sm:$0xff] %v493
                  %v495 = vld [vmem:[%s475 + $0x48] sm:$0xff]
                  %496 = vst [vmem:[%s476 + $0x48] sm:$0xff] %v495
                  %v497 = vld [vmem:[%s475 + $0x50] sm:$0xff]
                  %498 = vst [vmem:[%s476 + $0x50] sm:$0xff] %v497
                  %v499 = vld [vmem:[%s475 + $0x58] sm:$0xff]
                  %500 = vst [vmem:[%s476 + $0x58] sm:$0xff] %v499
                  %v501 = vld [vmem:[%s475 + $0x60] sm:$0xff]
                  %502 = vst [vmem:[%s476 + $0x60] sm:$0xff] %v501
                  %v503 = vld [vmem:[%s475 + $0x68] sm:$0xff]
                  %504 = vst [vmem:[%s476 + $0x68] sm:$0xff] %v503
                  %v505 = vld [vmem:[%s475 + $0x70] sm:$0xff]
                  %506 = vst [vmem:[%s476 + $0x70] sm:$0xff] %v505
                  %v507 = vld [vmem:[%s475 + $0x78] sm:$0xff]
                  %508 = vst [vmem:[%s476 + $0x78] sm:$0xff] %v507
                  %v509 = vld [vmem:[%s475 + $0x80] sm:$0xff]
                  %510 = vst [vmem:[%s476 + $0x80] sm:$0xff] %v509
                  %v511 = vld [vmem:[%s475 + $0x88] sm:$0xff]
                  %512 = vst [vmem:[%s476 + $0x88] sm:$0xff] %v511
                  %v513 = vld [vmem:[%s475 + $0x90] sm:$0xff]
                  %514 = vst [vmem:[%s476 + $0x90] sm:$0xff] %v513
                  %v515 = vld [vmem:[%s475 + $0x98] sm:$0xff]
                  %516 = vst [vmem:[%s476 + $0x98] sm:$0xff] %v515
                  %v517 = vld [vmem:[%s475 + $0xa0] sm:$0xff]
                  %518 = vst [vmem:[%s476 + $0xa0] sm:$0xff] %v517
                  %v519 = vld [vmem:[%s475 + $0xa8] sm:$0xff]
                  %520 = vst [vmem:[%s476 + $0xa8] sm:$0xff] %v519
                  %v521 = vld [vmem:[%s475 + $0xb0] sm:$0xff]
                  %522 = vst [vmem:[%s476 + $0xb0] sm:$0xff] %v521
                  %v523 = vld [vmem:[%s475 + $0xb8] sm:$0xff]
                  %524 = vst [vmem:[%s476 + $0xb8] sm:$0xff] %v523
                  %v525 = vld [vmem:[%s475 + $0xc0] sm:$0xff]
                  %526 = vst [vmem:[%s476 + $0xc0] sm:$0xff] %v525
                  %v527 = vld [vmem:[%s475 + $0xc8] sm:$0xff]
                  %528 = vst [vmem:[%s476 + $0xc8] sm:$0xff] %v527
                  %v529 = vld [vmem:[%s475 + $0xd0] sm:$0xff]
                  %530 = vst [vmem:[%s476 + $0xd0] sm:$0xff] %v529
                  %v531 = vld [vmem:[%s475 + $0xd8] sm:$0xff]
                  %532 = vst [vmem:[%s476 + $0xd8] sm:$0xff] %v531
                  %v533 = vld [vmem:[%s475 + $0xe0] sm:$0xff]
                  %534 = vst [vmem:[%s476 + $0xe0] sm:$0xff] %v533
                  %v535 = vld [vmem:[%s475 + $0xe8] sm:$0xff]
                  %536 = vst [vmem:[%s476 + $0xe8] sm:$0xff] %v535
                  %v537 = vld [vmem:[%s475 + $0xf0] sm:$0xff]
                  %538 = vst [vmem:[%s476 + $0xf0] sm:$0xff] %v537
                  %v539 = vld [vmem:[%s475 + $0xf8] sm:$0xff]
                  %540 = vst [vmem:[%s476 + $0xf8] sm:$0xff] %v539
                  %v541 = vld [vmem:[%s475 + $0x18] sm:$0xff]
                  %542 = vst [vmem:[%s476 + $0x10] sm:$0xff] %v541
                  %v543 = vld [vmem:[%s475 + $0x20] sm:$0xff]
                  %544 = vst [vmem:[%s476 + $0x18] sm:$0xff] %v543
                  %v545 = vld [vmem:[%s475 + $0x28] sm:$0xff]
                  %546 = vst [vmem:[%s476 + $0x20] sm:$0xff] %v545
                  %v547 = vld [vmem:[%s475 + $0x30] sm:$0xff]
                  %548 = vst [vmem:[%s476 + $0x28] sm:$0xff] %v547
                  %v549 = vld [vmem:[%s475 + $0x38] sm:$0xff]
                  %550 = vst [vmem:[%s476 + $0x30] sm:$0xff] %v549
                  %v551 = vld [vmem:[%s475 + $0x40] sm:$0xff]
                  %552 = vst [vmem:[%s476 + $0x38] sm:$0xff] %v551
                  %v553 = vld [vmem:[%s475 + $0x48] sm:$0xff]
                  %554 = vst [vmem:[%s476 + $0x40] sm:$0xff] %v553
                  %v555 = vld [vmem:[%s475 + $0x50] sm:$0xff]
                  %556 = vst [vmem:[%s476 + $0x48] sm:$0xff] %v555
                  %v557 = vld [vmem:[%s475 + $0x58] sm:$0xff]
                  %558 = vst [vmem:[%s476 + $0x50] sm:$0xff] %v557
                  %v559 = vld [vmem:[%s475 + $0x60] sm:$0xff]
                  %560 = vst [vmem:[%s476 + $0x58] sm:$0xff] %v559
                  %v561 = vld [vmem:[%s475 + $0x68] sm:$0xff]
                  %562 = vst [vmem:[%s476 + $0x60] sm:$0xff] %v561
                  %v563 = vld [vmem:[%s475 + $0x70] sm:$0xff]
                  %564 = vst [vmem:[%s476 + $0x68] sm:$0xff] %v563
                  %v565 = vld [vmem:[%s475 + $0x78] sm:$0xff]
                  %566 = vst [vmem:[%s476 + $0x70] sm:$0xff] %v565
                  %v567 = vld [vmem:[%s475 + $0x80] sm:$0xff]
                  %568 = vst [vmem:[%s476 + $0x78] sm:$0xff] %v567
                  %v569 = vld [vmem:[%s475 + $0x88] sm:$0xff]
                  %570 = vst [vmem:[%s476 + $0x80] sm:$0xff] %v569
                  %v571 = vld [vmem:[%s475 + $0x90] sm:$0xff]
                  %572 = vst [vmem:[%s476 + $0x88] sm:$0xff] %v571
                  %v573 = vld [vmem:[%s475 + $0x98] sm:$0xff]
                  %574 = vst [vmem:[%s476 + $0x90] sm:$0xff] %v573
                  %v575 = vld [vmem:[%s475 + $0xa0] sm:$0xff]
                  %576 = vst [vmem:[%s476 + $0x98] sm:$0xff] %v575
                  %v577 = vld [vmem:[%s475 + $0xa8] sm:$0xff]
                  %578 = vst [vmem:[%s476 + $0xa0] sm:$0xff] %v577
                  %v579 = vld [vmem:[%s475 + $0xb0] sm:$0xff]
                  %580 = vst [vmem:[%s476 + $0xa8] sm:$0xff] %v579
                  %v581 = vld [vmem:[%s475 + $0xb8] sm:$0xff]
                  %582 = vst [vmem:[%s476 + $0xb0] sm:$0xff] %v581
                  %v583 = vld [vmem:[%s475 + $0xc0] sm:$0xff]
                  %584 = vst [vmem:[%s476 + $0xb8] sm:$0xff] %v583
                  %v585 = vld [vmem:[%s475 + $0xc8] sm:$0xff]
                  %586 = vst [vmem:[%s476 + $0xc0] sm:$0xff] %v585
                  %v587 = vld [vmem:[%s475 + $0xd0] sm:$0xff]
                  %588 = vst [vmem:[%s476 + $0xc8] sm:$0xff] %v587
                  %v589 = vld [vmem:[%s475 + $0xd8] sm:$0xff]
                  %590 = vst [vmem:[%s476 + $0xd0] sm:$0xff] %v589
                  %v591 = vld [vmem:[%s475 + $0xe0] sm:$0xff]
                  %592 = vst [vmem:[%s476 + $0xd8] sm:$0xff] %v591
                  %v593 = vld [vmem:[%s475 + $0xe8] sm:$0xff]
                  %594 = vst [vmem:[%s476 + $0xe0] sm:$0xff] %v593
                  %v595 = vld [vmem:[%s475 + $0xf0] sm:$0xff]
                  %596 = vst [vmem:[%s476 + $0xe8] sm:$0xff] %v595
                  %v597 = vld [vmem:[%s475 + $0xf8] sm:$0xff]
                  %598 = vst [vmem:[%s476 + $0xf0] sm:$0xff] %v597
                  %v599 = vld [vmem:[%s475 + $0x100] sm:$0xff]
                  %600 = vst [vmem:[%s476 + $0xf8] sm:$0xff] %v599
                  %v601 = vld [vmem:[%s475 + $0x108] sm:$0xff]
                  %602 = vst [vmem:[%s476 + $0x100] sm:$0xff] %v601
                  %v603 = vld [vmem:[%s475 + $0x110] sm:$0xff]
                  %604 = vst [vmem:[%s476 + $0x108] sm:$0xff] %v603
                  %s605 = sadd.s32 1, %s474
                  %p606 = scmp.ge.s32.totalorder %s605, %s465
                  %s607 = scalar_select %p606, 0, %s605
                  %s608 = smul.u32 %s607, 256
                  %s609 = smul.u32 %s607, 256
                  %s610 = scalar_lea.vmem %s246, %s608
                  %s611 = scalar_lea.vmem %s238, %s609 [#allocation3]
                $region90: #{tpu_custom_call.1} parent=84 // loop_footer
                  %s471 = sadd.s32 %s469, 1
                $region91: #{tpu_custom_call.1} parent=84 // loop_footer_branch
                  %468 = sbr.rel target = $region87
                $region92: #{tpu_custom_call.1} parent=84 // loop_exit
                  _
                %s612 = sshrl.u32 %s464, 5
                %s613 = sand.u32 %s464, 31
                %s614 = smul.u32 %s612, 32
                %s615 = smul.u32 128, %s614
                %s616 = sshra.s32 %s615, 4
                %s617 = scalar_lea.vmem %s246, %s616
                %s618 = smul.u32 128, %s614
                %s619 = sshra.s32 %s618, 4
                %s620 = scalar_lea.vmem %s238, %s619 [#allocation3]
                // While loop
                $region93: #{tpu_custom_call.1} parent=84 // loop_pre_header
                  _
                $region94: #{tpu_custom_call.1} parent=84 // loop_header
                  %s624 = sphi 0, %s626
                  %p625 = scmp.ge.s32.totalorder %s624, %s613
                  %s629 = sphi 0, %s638
                  %s630 = sphi %s617, %s641
                  %s631 = sphi %s620, %s642
                $region95: #{tpu_custom_call.1} parent=84 // loop_header_branch
                  %628 = sbr.rel (%p625) target = $region99
                $region96: #{tpu_custom_call.1} parent=84 // loop_body
                  %v632 = vld [vmem:[%s630] sm:$0xff]
                  %633 = vst [vmem:[%s631] sm:$0xff] %v632
                  %v634 = vld [vmem:[%s630 + $0x18] sm:$0xff]
                  %635 = vst [vmem:[%s631 + $0x10] sm:$0xff] %v634
                  %s636 = sadd.s32 1, %s629
                  %p637 = scmp.ge.s32.totalorder %s636, %s613
                  %s638 = scalar_select %p637, 0, %s636
                  %s639 = smul.u32 %s638, 8
                  %s640 = smul.u32 %s638, 8
                  %s641 = scalar_lea.vmem %s617, %s639
                  %s642 = scalar_lea.vmem %s620, %s640 [#allocation3]
                $region97: #{tpu_custom_call.1} parent=84 // loop_footer
                  %s626 = sadd.s32 %s624, 1
                $region98: #{tpu_custom_call.1} parent=84 // loop_footer_branch
                  %623 = sbr.rel target = $region94
                $region99: #{tpu_custom_call.1} parent=84 // loop_exit
                  _
                %s643 = sshll.u32 1, %s459
                %s644 = ssub.s32 %s643, 1
                loop: start=0, step=1, limit=1
                $region100: #{tpu_custom_call.1} parent=84 // loop_pre_header
                  _
                $region101: #{tpu_custom_call.1} parent=84 // loop_header
                  %s646 = sphi 0, %s650
                  %p647 = scmp.ge.s32.totalorder %s646, 1
                  %s651 = sphi %s461, %s461
                  %s652 = sphi %s463, %s463
                $region102: #{tpu_custom_call.1} parent=84 // loop_header_branch
                  %649 = sbr.rel (%p647) target = $region106
                $region103: #{tpu_custom_call.1} parent=84 // loop_body
                  %v653 = vld [vmem:[%s651] sm:%s644]
                  %654 = vst [vmem:[%s652] sm:%s644] %v653
                  %v655 = vld [vmem:[%s651 + $0x18] sm:%s644]
                  %656 = vst [vmem:[%s652 + $0x10] sm:%s644] %v655
                $region104: #{tpu_custom_call.1} parent=84 // loop_footer
                  %s650 = sadd.s32 1, %s646
                $region105: #{tpu_custom_call.1} parent=84 // loop_footer_branch
                  %645 = sbr.rel target = $region101
                $region106: #{tpu_custom_call.1} parent=84 // loop_exit
                  _
              $region85: #{tpu_custom_call.1} parent=51 // pred_fallthru
                _
            $region52: #{tpu_custom_call.1} parent=47 // pred_fallthru
              _
            // Predicated region
            $region53: #{tpu_custom_call.1} parent=47 // pred_check
              %p255 = pneg %p251
            $region54: #{tpu_custom_call.1} parent=47 // pred_check_branch
              %257 = sbr.rel (%p255) target = $region56
            $region55: #{tpu_custom_call.1} parent=47 // pred_region
              %s258 = sshll.u32 1, %s247
              %s259 = ssub.s32 %s258, 1
              loop: start=0, step=1, limit=1
              $region57: #{tpu_custom_call.1} parent=55 // loop_pre_header
                _
              $region58: #{tpu_custom_call.1} parent=55 // loop_header
                %s261 = sphi 0, %s265
                %p262 = scmp.ge.s32.totalorder %s261, 1
                %s266 = sphi %s246, %s246
                %s267 = sphi %s238, %s238
              $region59: #{tpu_custom_call.1} parent=55 // loop_header_branch
                %264 = sbr.rel (%p262) target = $region63
              $region60: #{tpu_custom_call.1} parent=55 // loop_body
                %v268 = vld [vmem:[%s266] sm:%s259]
                %269 = vst [vmem:[%s267] sm:%s259] %v268
                %v270 = vld [vmem:[%s266 + $0x18] sm:%s259]
                %271 = vst [vmem:[%s267 + $0x10] sm:%s259] %v270
              $region61: #{tpu_custom_call.1} parent=55 // loop_footer
                %s265 = sadd.s32 1, %s261
              $region62: #{tpu_custom_call.1} parent=55 // loop_footer_branch
                %260 = sbr.rel target = $region58
              $region63: #{tpu_custom_call.1} parent=55 // loop_exit
                _
            $region56: #{tpu_custom_call.1} parent=47 // pred_fallthru
              _
          $region48: #{tpu_custom_call.1} parent=43 // pred_fallthru
            _
          %657 = vnop
        $region44: #{tpu_custom_call.1} parent=39 // pred_fallthru
          _
      $region40: #{tpu_custom_call.1} parent=5 // pred_fallthru
        _
      %p658 = scmp.le.s32.totalorder 1, %s17
      %p659 = scmp.lt.s32.totalorder %s17, 3
      %p660 = pnand %p658, %p659
      %p661 = pneg %p660
      // Predicated region
      $region107: #{tpu_custom_call.1} parent=5 // pred_check
        _
      $region108: #{tpu_custom_call.1} parent=5 // pred_check_branch
        %663 = sbr.rel (%p660) target = $region110
      $region109: #{tpu_custom_call.1} parent=5 // pred_region
        %s664 = ssub.s32 %s17, 1
        %s665 = sand.u32 %s30, 1
        %s666 = sand.u32 %s30, 1
        %s667 = smul.addr %s666, 32
        %s668 = scalar_lea.vmem [#allocation3], %s667
        // Predicated region
        $region111: #{tpu_custom_call.1} parent=109 // pred_check
          %p669 = pneg %p43
        $region112: #{tpu_custom_call.1} parent=109 // pred_check_branch
          %671 = sbr.rel (%p669) target = $region114
        $region113: #{tpu_custom_call.1} parent=109 // pred_region
          _
        $region114: #{tpu_custom_call.1} parent=109 // pred_fallthru
          _
        %s672 = sand.u32 %s30, 1
        %s673 = sand.u32 %s30, 1
        %s674 = smul.addr %s673, 32
        %s675 = scalar_lea.vmem [#allocation3], %s674
        %p676 = pneg %p43
        %p677 = pneg %p40
        %p678 = pneg %p64
        %p679 = pneg %p61
        %p680 = pneg %p85
        %p681 = pneg %p82
        %p682 = pneg %p106
        %p683 = pneg %p103
        %p684 = pneg %p127
        %p685 = pneg %p124
        %p686 = pneg %p148
        %p687 = pneg %p145
        %p688 = pneg %p169
        %p689 = pneg %p166
        %p690 = pneg %p195
        %p691 = pneg %p192
        %s692 = sand.u32 %s182, 1
        %s693 = scalar_lea.sflag [#allocation5], %s692
        %s694 = sand.u32 %s182, 1
        %s695 = smul.addr %s694, 2
        %s696 = scalar_lea.vmem [#allocation4], %s695
        %s697 = smul.u32 2, %s22
        %s698 = ssub.s32 3, %s697
        %p699 = scmp.lt.s32.totalorder %s698, 2
        %s700 = scalar_select %p699, %s698, 2
        %s701 = smul.u32 256, %s700
        %s702 = smul.u32 2, %s22
        %s703 = ssub.s32 3, %s702
        %p704 = scmp.lt.s32.totalorder %s703, 2
        %s705 = scalar_select %p704, %s703, 2
        %s706 = smul.u32 16, %s705
        %v707 = vld [vmem:[%s668] sm:$0xff]
        %v708 = vld [vmem:[%s668 + $0x8] sm:$0xff]
        %v709 = vld [vmem:[%s668 + $0x10] sm:$0xff]
        %v710 = vld [vmem:[%s668 + $0x18] sm:$0xff]
        %v711 = vld [vmem:[%s1] sm:$0xff]
        %v712 = vld [vmem:[%s1 + $0x8] sm:$0xff]
        %v713 = vld [vmem:[%s1 + $0x10] sm:$0xff]
        %v714 = vld [vmem:[%s1 + $0x18] sm:$0xff]
        %v715 = vld [vmem:[%s2] sm:$0xff]
        %v716 = vld [vmem:[%s2 + $0x8] sm:$0xff]
        %v717 = vld [vmem:[%s2 + $0x10] sm:$0xff]
        %v718 = vld [vmem:[%s2 + $0x18] sm:$0xff]
        %720 = vset.pattern.permute.xlu0 0
        %721 = vperm.xlu0 %720, %v715
        %v722 = vpop.permute.xlu0 %721
        %725 = vset.pattern.permute.xlu0 0
        %726 = vperm.xlu0 %725, %v716
        %v727 = vpop.permute.xlu0 %726
        %730 = vset.pattern.permute.xlu0 0
        %731 = vperm.xlu0 %730, %v717
        %v732 = vpop.permute.xlu0 %731
        %735 = vset.pattern.permute.xlu0 0
        %736 = vperm.xlu0 %735, %v718
        %v737 = vpop.permute.xlu0 %736
        %vm739 = vcmask 130048
        %v741 = vsel %vm739, %v711, 0
        %v744 = vsel %vm739, %v712, 0
        %v747 = vsel %vm739, %v713, 0
        %v750 = vsel %vm739, %v714, 0
        %752 = vmatprep.subr.mxu0 0.0
        %753 = vmatpush1.msra.mxu0 0.0
        %754 = vmatprep.subr.mxu0 0.0
        %755 = vmatpush1.msra.mxu0 0.0
        %756 = vmatprep.subr.mxu0 0.0
        %757 = vmatpush1.msra.mxu0 0.0
        %758 = vmatprep.subr.mxu0 0.0
        %759 = vmatpush1.msra.mxu0 0.0
        %760 = vmatprep.subr.mxu0 0.0
        %761 = vmatpush1.msra.mxu0 0.0
        %762 = vmatprep.subr.mxu0 0.0
        %763 = vmatpush1.msra.mxu0 0.0
        %764 = vmatprep.subr.mxu0 0.0
        %765 = vmatpush1.msra.mxu0 0.0
        %766 = vmatprep.subr.mxu0 0.0
        %767 = vmatpush1.msra.mxu0 0.0
        %768 = vmatprep.subr.mxu0 0.0
        %769 = vmatpush1.msra.mxu0 0.0
        %770 = vmatprep.subr.mxu0 0.0
        %771 = vmatpush1.msra.mxu0 0.0
        %772 = vmatprep.subr.mxu0 0.0
        %773 = vmatpush1.msra.mxu0 0.0
        %774 = vmatprep.subr.mxu0 0.0
        %775 = vmatpush1.msra.mxu0 0.0
        %776 = vmatprep.subr.mxu0 0.0
        %777 = vmatpush1.msra.mxu0 0.0
        %778 = vmatprep.subr.mxu0 0.0
        %779 = vmatpush1.msra.mxu0 0.0
        %780 = vmatprep.subr.mxu0 %v710
        %781 = vmatpush1.msra.mxu0 %v709
        %782 = vmatprep.subr.mxu0 %v708
        %783 = vmatpush1.msra.mxu0 %v707
        %784 = vmatprep.subr.mxu0 0.0
        %785 = vmatpush2.msra.mxu0 0.0
        %786 = vmatprep.subr.mxu0 0.0
        %787 = vmatpush2.msra.mxu0 0.0
        %788 = vmatprep.subr.mxu0 0.0
        %789 = vmatpush2.msra.mxu0 0.0
        %790 = vmatprep.subr.mxu0 0.0
        %791 = vmatpush2.msra.mxu0 0.0
        %792 = vmatprep.subr.mxu0 0.0
        %793 = vmatpush2.msra.mxu0 0.0
        %794 = vmatprep.subr.mxu0 0.0
        %795 = vmatpush2.msra.mxu0 0.0
        %796 = vmatprep.subr.mxu0 0.0
        %797 = vmatpush2.msra.mxu0 0.0
        %798 = vmatprep.subr.mxu0 0.0
        %799 = vmatpush2.msra.mxu0 0.0
        %800 = vmatprep.subr.mxu0 0.0
        %801 = vmatpush2.msra.mxu0 0.0
        %802 = vmatprep.subr.mxu0 0.0
        %803 = vmatpush2.msra.mxu0 0.0
        %804 = vmatprep.subr.mxu0 0.0
        %805 = vmatpush2.msra.mxu0 0.0
        %806 = vmatprep.subr.mxu0 0.0
        %807 = vmatpush2.msra.mxu0 0.0
        %808 = vmatprep.subr.mxu0 0.0
        %809 = vmatpush2.msra.mxu0 0.0
        %810 = vmatprep.subr.mxu0 0.0
        %811 = vmatpush2.msra.mxu0 0.0
        %812 = vmatprep.subr.mxu0 0.0
        %813 = vmatpush2.msra.mxu0 0.0
        %814 = vmatprep.subr.mxu0 0.0
        %815 = vmatpush2.msra.mxu0 0.0
        %816 = vmatprep.mubr.f32.mxu0 0.0
        %817 = vmatmul.mubr.f32.gmra.mxu0 %v741
        %v818 = vpop.f32.mrf.mxu0
        %v819 = vadd.f32 %v722, %v818
        %v820 = vpop.f32.mrf.mxu0
        %v821 = vadd.f32 %v722, %v820
        %822 = vmatprep.mubr.f32.mxu0 0.0
        %823 = vmatmul.mubr.f32.gmra.mxu0 %v744
        %v824 = vpop.f32.mrf.mxu0
        %v825 = vadd.f32 %v727, %v824
        %v826 = vpop.f32.mrf.mxu0
        %v827 = vadd.f32 %v727, %v826
        %828 = vmatprep.mubr.f32.mxu0 0.0
        %829 = vmatmul.mubr.f32.gmra.mxu0 %v747
        %v830 = vpop.f32.mrf.mxu0
        %v831 = vadd.f32 %v732, %v830
        %v832 = vpop.f32.mrf.mxu0
        %v833 = vadd.f32 %v732, %v832
        %834 = vmatprep.mubr.f32.mxu0 0.0
        %835 = vmatmul.mubr.f32.gmra.mxu0 %v750
        %v836 = vpop.f32.mrf.mxu0
        %v837 = vadd.f32 %v737, %v836
        %v838 = vpop.f32.mrf.mxu0
        %v839 = vadd.f32 %v737, %v838
        %840 = vdwg.mxu0
        %v841 = vmax.f32 %v819, 0.0
        %v842 = vmax.f32 %v821, 0.0
        %v843 = vmax.f32 %v825, 0.0
        %v844 = vmax.f32 %v827, 0.0
        %v845 = vmax.f32 %v831, 0.0
        %v846 = vmax.f32 %v833, 0.0
        %v847 = vmax.f32 %v837, 0.0
        %v848 = vmax.f32 %v839, 0.0
        %v849 = vld [vmem:[%s3] sm:$0xff]
        %v850 = vld [vmem:[%s3 + $0x8] sm:$0xff]
        %v851 = vld [vmem:[%s4] sm:$0xff]
        %v852 = vld [vmem:[%s4 + $0x8] sm:$0xff]
        %854 = vset.pattern.permute.xlu0 0
        %855 = vperm.xlu0 %854, %v851
        %v856 = vpop.permute.xlu0 %855
        %859 = vset.pattern.permute.xlu0 0
        %860 = vperm.xlu0 %859, %v852
        %v861 = vpop.permute.xlu0 %860
        %vm863 = vcmask 261120
        %v865 = vsel %vm863, %v849, 0
        %v868 = vsel %vm863, %v850, 0
        %870 = vmatprep.subr.mxu0 0.0
        %871 = vmatpush1.msra.mxu0 0.0
        %872 = vmatprep.subr.mxu0 0.0
        %873 = vmatpush1.msra.mxu0 0.0
        %874 = vmatprep.subr.mxu0 0.0
        %875 = vmatpush1.msra.mxu0 0.0
        %876 = vmatprep.subr.mxu0 0.0
        %877 = vmatpush1.msra.mxu0 0.0
        %878 = vmatprep.subr.mxu0 0.0
        %879 = vmatpush1.msra.mxu0 0.0
        %880 = vmatprep.subr.mxu0 0.0
        %881 = vmatpush1.msra.mxu0 0.0
        %882 = vmatprep.subr.mxu0 0.0
        %883 = vmatpush1.msra.mxu0 0.0
        %884 = vmatprep.subr.mxu0 0.0
        %885 = vmatpush1.msra.mxu0 0.0
        %886 = vmatprep.subr.mxu0 0.0
        %887 = vmatpush1.msra.mxu0 0.0
        %888 = vmatprep.subr.mxu0 0.0
        %889 = vmatpush1.msra.mxu0 0.0
        %890 = vmatprep.subr.mxu0 0.0
        %891 = vmatpush1.msra.mxu0 0.0
        %892 = vmatprep.subr.mxu0 0.0
        %893 = vmatpush1.msra.mxu0 0.0
        %894 = vmatprep.subr.mxu0 %v848
        %895 = vmatpush1.msra.mxu0 %v847
        %896 = vmatprep.subr.mxu0 %v846
        %897 = vmatpush1.msra.mxu0 %v845
        %898 = vmatprep.subr.mxu0 %v844
        %899 = vmatpush1.msra.mxu0 %v843
        %900 = vmatprep.subr.mxu0 %v842
        %901 = vmatpush1.msra.mxu0 %v841
        %902 = vmatprep.subr.mxu0 0.0
        %903 = vmatpush2.msra.mxu0 0.0
        %904 = vmatprep.subr.mxu0 0.0
        %905 = vmatpush2.msra.mxu0 0.0
        %906 = vmatprep.subr.mxu0 0.0
        %907 = vmatpush2.msra.mxu0 0.0
        %908 = vmatprep.subr.mxu0 0.0
        %909 = vmatpush2.msra.mxu0 0.0
        %910 = vmatprep.subr.mxu0 0.0
        %911 = vmatpush2.msra.mxu0 0.0
        %912 = vmatprep.subr.mxu0 0.0
        %913 = vmatpush2.msra.mxu0 0.0
        %914 = vmatprep.subr.mxu0 0.0
        %915 = vmatpush2.msra.mxu0 0.0
        %916 = vmatprep.subr.mxu0 0.0
        %917 = vmatpush2.msra.mxu0 0.0
        %918 = vmatprep.subr.mxu0 0.0
        %919 = vmatpush2.msra.mxu0 0.0
        %920 = vmatprep.subr.mxu0 0.0
        %921 = vmatpush2.msra.mxu0 0.0
        %922 = vmatprep.subr.mxu0 0.0
        %923 = vmatpush2.msra.mxu0 0.0
        %924 = vmatprep.subr.mxu0 0.0
        %925 = vmatpush2.msra.mxu0 0.0
        %926 = vmatprep.subr.mxu0 0.0
        %927 = vmatpush2.msra.mxu0 0.0
        %928 = vmatprep.subr.mxu0 0.0
        %929 = vmatpush2.msra.mxu0 0.0
        %930 = vmatprep.subr.mxu0 0.0
        %931 = vmatpush2.msra.mxu0 0.0
        %932 = vmatprep.subr.mxu0 0.0
        %933 = vmatpush2.msra.mxu0 0.0
        %934 = vmatprep.mubr.f32.mxu0 0.0
        %935 = vmatmul.mubr.f32.gmra.mxu0 %v865
        %v936 = vpop.f32.mrf.mxu0
        %v937 = vadd.f32 %v856, %v936
        %v938 = vpop.f32.mrf.mxu0
        %v939 = vadd.f32 %v856, %v938
        %940 = vmatprep.mubr.f32.mxu0 0.0
        %941 = vmatmul.mubr.f32.gmra.mxu0 %v868
        %v942 = vpop.f32.mrf.mxu0
        %v943 = vadd.f32 %v861, %v942
        %v944 = vpop.f32.mrf.mxu0
        %v945 = vadd.f32 %v861, %v944
        %946 = vdwg.mxu0
        %v947 = vmax.f32 %v937, 0.0
        %v948 = vmax.f32 %v939, 0.0
        %v949 = vmax.f32 %v943, 0.0
        %v950 = vmax.f32 %v945, 0.0
        %v951 = vld [vmem:[%s5] sm:$0xff]
        %v952 = vld [vmem:[%s5 + $0x8] sm:$0xff]
        %954 = vset.pattern.permute.xlu0 0
        %955 = vperm.xlu0 %954, %v951
        %v956 = vpop.permute.xlu0 %955
        %959 = vset.pattern.permute.xlu0 0
        %960 = vperm.xlu0 %959, %v952
        %v961 = vpop.permute.xlu0 %960
        %v963 = vmul.f32 %v956, %v947
        %v964 = vmul.f32 %v956, %v948
        %v965 = vmul.f32 %v961, %v949
        %v966 = vmul.f32 %v961, %v950
        %v967 = vadd.f32 %v963, %v965
        %v968 = vrot.slane %v967, 4
        %v969 = vadd.f32 %v967, %v968
        %v970 = vrot.slane %v969, 2
        %v971 = vadd.f32 %v969, %v970
        %v972 = vrot.slane %v971, 1
        %v973 = vadd.f32 %v971, %v972
        %v974 = vadd.f32 %v964, %v966
        %v975 = vrot.slane %v974, 4
        %v976 = vadd.f32 %v974, %v975
        %v977 = vrot.slane %v976, 2
        %v978 = vadd.f32 %v976, %v977
        %v979 = vrot.slane %v978, 1
        %v980 = vadd.f32 %v978, %v979
        %s981 = sld [smem:[#allocation2]]
        %v982 = vstv %s981
        %v983 = vadd.f32 %v973, %v982
        %v984 = vadd.f32 %v980, %v982
        %v987 = vcombine.low %v983, %v984
        %v989 = vunpack.c.l.s4 1966171168
        %v990 = vunpack.c.0.s8 %v989
        %v991 = vlaneseq
        %v992 = vshrl.u32 %v991, 7
        %v993 = vsub.s32 %v990, %v992
        %v994 = vrot.slane %v987, %v993
        %v996 = vunpack.c.l.s4 1966171168
        %v997 = vunpack.c.0.s8 %v996
        %v998 = vlaneseq
        %v999 = vshrl.u32 %v998, 7
        %v1000 = vsub.s32 %v997, %v999
        %v1001 = vrot.slane %v994, %v1000
        %v1003 = vlaneseq
        %vm1004 = vcmp.ge.s32.totalorder %v1003, 0
        %vm1005 = vcmp.lt.s32.totalorder %v1003, 256
        %vm1006 = vmand %vm1004, %vm1005
        %1007 = vst.msk [vmem:[%s696] sm:$0x3] %vm1006, %v1001
        %s1008 = sand.u32 %s182, 1
        %s1009 = scalar_lea.sflag [#allocation5], %s1008
        %s1010 = sand.u32 %s182, 1
        %s1011 = smul.addr %s1010, 2
        %s1012 = scalar_lea.vmem [#allocation4], %s1011
        // Predicated region
        $region115: #{tpu_custom_call.1} parent=109 // pred_check
          %p1013 = pneg %p192
        $region116: #{tpu_custom_call.1} parent=109 // pred_check_branch
          %1015 = sbr.rel (%p1013) target = $region118
        $region117: #{tpu_custom_call.1} parent=109 // pred_region
          %s1016 = smul.u32 2, %s22
          %s1017 = ssub.s32 3, %s1016
          %p1018 = scmp.lt.s32.totalorder %s1017, 2
          %s1019 = scalar_select %p1018, %s1017, 2
          %s1020 = smul.u32 16, %s1019
          %s1022 = ssub.s32 32, %s1020
          %1023 = vsyncadd %s1009, %s1022
          %p1024 = scmp.ne.s32.totalorder 0, %s1020
          %s1025 = smul.addr %s1016, 16
          %s1026 = scalar_lea.hbm %s7, %s1025
          %s1027 = sshll.u32 %s1019, 4
          %s1028 = sshll.u32 %s1012, 4
          %s1029 = int_to_ptr.vmem [resolvable:$true] %s1028
          %1031 = dma.vmem_to_hbm [thread:$0]  (%p1024), %s1029, %s1027, %s1026, %s1009
        $region118: #{tpu_custom_call.1} parent=109 // pred_fallthru
          _
      $region110: #{tpu_custom_call.1} parent=5 // pred_fallthru
        _
      %p1032 = scmp.le.s32.totalorder 2, %s17
      // Predicated region
      $region119: #{tpu_custom_call.1} parent=5 // pred_check
        %p1033 = pneg %p1032
      $region120: #{tpu_custom_call.1} parent=5 // pred_check_branch
        %1035 = sbr.rel (%p1033) target = $region122
      $region121: #{tpu_custom_call.1} parent=5 // pred_region
        %s1036 = ssub.s32 %s17, 2
        // Predicated region
        $region123: #{tpu_custom_call.1} parent=121 // pred_check
          %p1037 = pneg %p198
        $region124: #{tpu_custom_call.1} parent=121 // pred_check_branch
          %1039 = sbr.rel (%p1037) target = $region126
        $region125: #{tpu_custom_call.1} parent=121 // pred_region
          %s1040 = sand.u32 %s183, 1
          %s1041 = scalar_lea.sflag [#allocation5], %s1040
          %s1042 = sand.u32 %s183, 1
          %s1043 = smul.addr %s1042, 2
          %s1044 = scalar_lea.vmem [#allocation4], %s1043
          %1045 = dma.done %s1041, 32
        $region126: #{tpu_custom_call.1} parent=121 // pred_fallthru
          _
      $region122: #{tpu_custom_call.1} parent=5 // pred_fallthru
        _
    $region6: #{tpu_custom_call.1} parent=1 // loop_footer
      %s21 = sadd.s32 1, %s17
    $region7: #{tpu_custom_call.1} parent=1 // loop_footer_branch
      %16 = sbr.rel target = $region3
    $region8: #{tpu_custom_call.1} parent=1 // loop_exit
      _
    %1046 = vsyncpa [#allocation5], 1
    %s1047 = scalar_lea.sflag [#allocation5], 1
    %1048 = vsyncpa %s1047, 1

</llo_original>
